<compile_context>
chip_gen: v6e
topology: v6e:2x2x1
jax: 0.10.0
libtpu: 0.0.40
codegen_flags: <defaults>
</compile_context>

<pallas_src>
import functools

import jax
import jax.numpy as jnp
from jax import lax
from jax.experimental import pallas as pl
from jax.experimental.pallas import tpu as pltpu

EPS = 1e-5                      # nn.GroupNorm default eps
_SQRT_HALF = 0.7071067811865476
_SQRT_2_OVER_PI = 0.7978845608028654


def _gelu(x, approx):
    if approx:
        # tanh approximation: transcendental runs on the (otherwise idle) EUP
        # slot instead of a long VPU erf polynomial.  Not bit-identical to the
        # PyTorch F.gelu default, so it is opt-in.
        return 0.5 * x * (1.0 + jnp.tanh(_SQRT_2_OVER_PI * (x + 0.044715 * x * x * x)))
    # PyTorch F.gelu default (approximate='none'): 0.5*x*(1+erf(x/sqrt(2)))
    return 0.5 * x * (1.0 + lax.erf(x * _SQRT_HALF))


def _pad_to(v, m):
    return ((v + m - 1) // m) * m


def _vmem_capacity_bytes():
    try:
        return int(pltpu.get_tpu_info().vmem_capacity_bytes)
    except Exception:
        return 64 * 1024 * 1024  # conservative default = v7x per-core VMEM


def _pick_tile_l(L, max_rows):
    """Largest in-kernel L tile: a multiple of 128 dividing L, sized so the
    biggest live (rows x TL) f32 value stays within a comfortable vreg budget."""
    if L % 128 != 0:
        return L  # single full-width tile (block == full dims is still legal)
    lane_budget = max(128, (256 * 1024) // (4 * max(_pad_to(max_rows, 8), 8)))
    for cand in (2048, 1024, 768, 512, 384, 256, 128):
        if cand <= lane_budget and L % cand == 0:
            return cand
    return 128


def _vmem_requirement_bytes(Cin, Cmid, Cout, L, x_isz, w_isz, scr_isz, out_isz):
    Lp = _pad_to(L, 128)
    req = 0
    # BlockSpec windows are double-buffered by the pipeline.
    req += 2 * _pad_to(Cin, 8) * Lp * x_isz                          # x sample block
    req += 2 * _pad_to(Cout, 8) * Lp * out_isz                       # out sample block
    req += 2 * (_pad_to(Cmid, 8) * _pad_to(Cin, 128)
                + _pad_to(Cout, 8) * _pad_to(Cmid, 128)) * w_isz     # weights
    req += 2 * 3 * (_pad_to(Cmid, 8) + _pad_to(Cout, 8)) * 128 * 4   # bias/gamma/beta
    # Persistent scratch: NOT double-buffered.
    req += _pad_to(Cmid, 8) * Lp * scr_isz                           # h
    req += _pad_to(Cout, 8) * Lp * scr_isz                           # y
    return req


@functools.partial(
    jax.jit,
    static_argnames=("tile_l", "matmul_dtype", "scratch_dtype", "out_dtype", "approx_gelu"))
def mlp1d_forward(x_ncl, params, *, tile_l=None, matmul_dtype=jnp.float32,
                  scratch_dtype=jnp.float32, out_dtype=jnp.float32,
                  approx_gelu=False):
    """x_ncl: (N, C_in, L) in the PyTorch NCL convention. No layout transposes."""
    w1, b1, g1, be1, w2, b2, g2, be2 = params
    N, Cin, L = x_ncl.shape
    Cmid, Cout = w1.shape[0], w2.shape[0]

    tl = tile_l if tile_l is not None else _pick_tile_l(L, max(Cin, Cmid, Cout))
    assert L % tl == 0, "L tile must divide L"
    assert tl == L or tl % 128 == 0, "L tile must be a multiple of 128 (or == L)"
    n_tiles = L // tl

    # Per-channel params as (C, 1) columns -> broadcast along the L lanes.
    b1c, g1c, be1c = b1.reshape(Cmid, 1), g1.reshape(Cmid, 1), be1.reshape(Cmid, 1)
    b2c, g2c, be2c = b2.reshape(Cout, 1), g2.reshape(Cout, 1), be2.reshape(Cout, 1)

    # Weights are tiny: cast in the wrapper. x is NOT cast here (that would be a
    # full extra HBM pass); any cast happens per-tile in VMEM inside the kernel.
    w1_in = w1.astype(matmul_dtype)
    w2_in = w2.astype(matmul_dtype)

    # ---- VMEM budgeting: real requirement vs. physical capacity, fail loudly ----
    cap = _vmem_capacity_bytes()
    budget = int(cap * 0.9) - (4 << 20)   # headroom for compiler-internal scratch
    req = _vmem_requirement_bytes(
        Cin, Cmid, Cout, L,
        x_ncl.dtype.itemsize, jnp.dtype(matmul_dtype).itemsize,
        jnp.dtype(scratch_dtype).itemsize, jnp.dtype(out_dtype).itemsize)
    if req > budget:
        raise ValueError(
            f"MLP1d Pallas kernel needs ~{req >> 20} MiB VMEM but only ~{max(budget, 0) >> 20} MiB "
            f"is usable on this TPU ({cap >> 20} MiB physical). Try scratch_dtype=jnp.bfloat16, "
            "matmul_dtype=jnp.bfloat16, smaller mid/out channels, or shorter L per call.")
    vmem_limit = int(min(budget, max(req + (4 << 20), 32 << 20)))

    def kernel(x_ref, w1_ref, b1_ref, g1_ref, be1_ref,
               w2_ref, b2_ref, g2_ref, be2_ref, o_ref,
               h_scr, y_scr):
        inv_n1 = jnp.float32(1.0 / (Cmid * L))
        inv_n2 = jnp.float32(1.0 / (Cout * L))
        zero = jnp.zeros((1, 1), jnp.float32)

        # ---- pass A: h = W1 @ x + b1 per L-tile; accumulate sum(h) ----
        def conv1_body(i, acc):
            start = pl.multiple_of(i * tl, tl)
            x = x_ref[:, pl.ds(start, tl)].astype(w1_ref.dtype)   # in-VMEM cast
            h = jnp.dot(w1_ref[...], x,
                        preferred_element_type=jnp.float32) + b1_ref[...]
            h_scr[:, pl.ds(start, tl)] = h.astype(h_scr.dtype)
            return acc + jnp.sum(h, keepdims=True)
        sum_h = lax.fori_loop(0, n_tiles, conv1_body, zero)
        mean1 = sum_h * inv_n1

        # ---- pass B: centered (two-pass) variance for GN1 ----
        def var1_body(i, acc):
            start = pl.multiple_of(i * tl, tl)
            d = h_scr[:, pl.ds(start, tl)].astype(jnp.float32) - mean1
            return acc + jnp.sum(d * d, keepdims=True)
        var1 = lax.fori_loop(0, n_tiles, var1_body, zero) * inv_n1
        rstd1 = lax.rsqrt(var1 + EPS)
        s1 = g1_ref[...] * rstd1                 # GN1 normalize+affine folded
        t1 = be1_ref[...] - mean1 * s1           # into a single FMA per element

        # ---- pass C: GN1 + GELU + conv2 per L-tile; accumulate sum(y) ----
        def conv2_body(i, acc):
            start = pl.multiple_of(i * tl, tl)
            hn = h_scr[:, pl.ds(start, tl)].astype(jnp.float32) * s1 + t1
            hn = _gelu(hn, approx_gelu)
            y = jnp.dot(w2_ref[...], hn.astype(w2_ref.dtype),
                        preferred_element_type=jnp.float32) + b2_ref[...]
            y_scr[:, pl.ds(start, tl)] = y.astype(y_scr.dtype)
            return acc + jnp.sum(y, keepdims=True)
        sum_y = lax.fori_loop(0, n_tiles, conv2_body, zero)
        mean2 = sum_y * inv_n2

        # ---- pass D: centered variance for GN2 ----
        def var2_body(i, acc):
            start = pl.multiple_of(i * tl, tl)
            d = y_scr[:, pl.ds(start, tl)].astype(jnp.float32) - mean2
            return acc + jnp.sum(d * d, keepdims=True)
        var2 = lax.fori_loop(0, n_tiles, var2_body, zero) * inv_n2
        rstd2 = lax.rsqrt(var2 + EPS)
        s2 = g2_ref[...] * rstd2
        t2 = be2_ref[...] - mean2 * s2

        # ---- pass E: GN2 + lane-dense output stores ----
        def store_body(i, carry):
            start = pl.multiple_of(i * tl, tl)
            yn = y_scr[:, pl.ds(start, tl)].astype(jnp.float32) * s2 + t2
            o_ref[:, pl.ds(start, tl)] = yn.astype(o_ref.dtype)
            return carry
        lax.fori_loop(0, n_tiles, store_body, zero)

    const = lambda n: (0, 0)
    out = pl.pallas_call(
        kernel,
        out_shape=jax.ShapeDtypeStruct((N, Cout, L), out_dtype),
        grid_spec=pltpu.PrefetchScalarGridSpec(
            num_scalar_prefetch=0,
            grid=(N,),
            in_specs=[
                pl.BlockSpec((pl.Squeezed(), Cin, L), lambda n: (n, 0, 0)),
                pl.BlockSpec((Cmid, Cin), const),
                pl.BlockSpec((Cmid, 1), const),
                pl.BlockSpec((Cmid, 1), const),
                pl.BlockSpec((Cmid, 1), const),
                pl.BlockSpec((Cout, Cmid), const),
                pl.BlockSpec((Cout, 1), const),
                pl.BlockSpec((Cout, 1), const),
                pl.BlockSpec((Cout, 1), const),
            ],
            out_specs=pl.BlockSpec((pl.Squeezed(), Cout, L), lambda n: (n, 0, 0)),
            scratch_shapes=[
                pltpu.VMEM((Cmid, L), scratch_dtype),   # h (pre-GN1), whole sample
                pltpu.VMEM((Cout, L), scratch_dtype),   # y (pre-GN2), whole sample
            ],
        ),
        compiler_params=pltpu.CompilerParams(
            # Samples are independent -> on v7x the two TensorCores split N.
            # TODO(synk): for a per-chip N == 1 case on v7x, split the L tiles
            # across the two cores with per-core partial GN sums combined via CMEM.
            dimension_semantics=("parallel",),
            vmem_limit_bytes=vmem_limit,
        ),
    )(x_ncl, w1_in, b1c, g1c, be1c, w2_in, b2c, g2c, be2c)
    return out


def init_params(key, in_channels, mid_channels, out_channels):
    """Synthetic init matching PyTorch Conv1d(k=1) defaults; weights kept in the
    PyTorch (out, in) layout so the kernel computes W @ x directly in NCL."""
    k1, k2, k3, k4 = jax.random.split(key, 4)
    s1 = 1.0 / jnp.sqrt(in_channels)
    s2 = 1.0 / jnp.sqrt(mid_channels)
    w1 = jax.random.uniform(k1, (mid_channels, in_channels), jnp.float32, -s1, s1)
    b1 = jax.random.uniform(k2, (mid_channels,), jnp.float32, -s1, s1)
    w2 = jax.random.uniform(k3, (out_channels, mid_channels), jnp.float32, -s2, s2)
    b2 = jax.random.uniform(k4, (out_channels,), jnp.float32, -s2, s2)
    g1 = jnp.ones((mid_channels,), jnp.float32)
    be1 = jnp.zeros((mid_channels,), jnp.float32)
    g2 = jnp.ones((out_channels,), jnp.float32)
    be2 = jnp.zeros((out_channels,), jnp.float32)
    return (w1, b1, g1, be1, w2, b2, g2, be2)


def _reference(x_ncl, params):
    """Pure-JAX reference of the PyTorch forward (native NCL layout)."""
    w1, b1, g1, be1, w2, b2, g2, be2 = params
    h = jnp.einsum('mc,ncl->nml', w1, x_ncl) + b1[None, :, None]
    m = jnp.mean(h, axis=(1, 2), keepdims=True)
    v = jnp.mean((h - m) ** 2, axis=(1, 2), keepdims=True)
    h = (h - m) / jnp.sqrt(v + EPS) * g1[None, :, None] + be1[None, :, None]
    h = 0.5 * h * (1.0 + lax.erf(h / jnp.sqrt(2.0)))
    y = jnp.einsum('om,nml->nol', w2, h) + b2[None, :, None]
    m = jnp.mean(y, axis=(1, 2), keepdims=True)
    v = jnp.mean((y - m) ** 2, axis=(1, 2), keepdims=True)
    y = (y - m) / jnp.sqrt(v + EPS) * g2[None, :, None] + be2[None, :, None]
    return y


if __name__ == "__main__":
    key = jax.random.PRNGKey(0)
    kx, kp = jax.random.split(key)

    # Small demo shapes; L=256 with tile_l=128 exercises the multi-tile
    # in-kernel loops (2 L-tiles per sample, all five passes).
    N, Cin, Cmid, Cout, L = 2, 4, 32, 8, 256
    x = jax.random.normal(kx, (N, Cin, L), jnp.float32)       # NCL, like PyTorch
    params = init_params(kp, Cin, Cmid, Cout)

    out = mlp1d_forward(x, params, tile_l=128)
    out = jax.block_until_ready(out)

    ref = _reference(x, params)
    assert out.shape == (N, Cout, L)
    err = float(jnp.max(jnp.abs(out - ref)))
    assert jnp.allclose(out, ref, atol=2e-4, rtol=2e-4), err

    print("KERNEL_OK")
</pallas_src>

<mosaic_0001>
module attributes {stable_mosaic.version = 11 : i64} {
  func.func @kernel(%arg0: i32, %arg1: memref<1x4x256xf32, #tpu.memory_space<vmem>>, %arg2: memref<32x4xf32, #tpu.memory_space<vmem>>, %arg3: memref<32x1xf32, #tpu.memory_space<vmem>>, %arg4: memref<32x1xf32, #tpu.memory_space<vmem>>, %arg5: memref<32x1xf32, #tpu.memory_space<vmem>>, %arg6: memref<8x32xf32, #tpu.memory_space<vmem>>, %arg7: memref<8x1xf32, #tpu.memory_space<vmem>>, %arg8: memref<8x1xf32, #tpu.memory_space<vmem>>, %arg9: memref<8x1xf32, #tpu.memory_space<vmem>>, %arg10: memref<1x8x256xf32, #tpu.memory_space<vmem>>, %arg11: memref<32x256xf32, #tpu.memory_space<vmem>>, %arg12: memref<8x256xf32, #tpu.memory_space<vmem>>) attributes {dimension_semantics = [#tpu.dimension_semantics<parallel>], iteration_bounds = array<i64: 2>, scalar_prefetch = 0 : i64, scratch_operands = 2 : i64, tpu.core_type = #tpu.core_type<tc>, window_params = [{transform_indices = @transform_0, window_bounds = array<i64: 1, 4, 256>}, {pipeline_mode = #tpu.pipeline_mode<synchronous>, transform_indices = @transform_1, window_bounds = array<i64: 32, 4>}, {pipeline_mode = #tpu.pipeline_mode<synchronous>, transform_indices = @transform_2, window_bounds = array<i64: 32, 1>}, {pipeline_mode = #tpu.pipeline_mode<synchronous>, transform_indices = @transform_3, window_bounds = array<i64: 32, 1>}, {pipeline_mode = #tpu.pipeline_mode<synchronous>, transform_indices = @transform_4, window_bounds = array<i64: 32, 1>}, {pipeline_mode = #tpu.pipeline_mode<synchronous>, transform_indices = @transform_5, window_bounds = array<i64: 8, 32>}, {pipeline_mode = #tpu.pipeline_mode<synchronous>, transform_indices = @transform_6, window_bounds = array<i64: 8, 1>}, {pipeline_mode = #tpu.pipeline_mode<synchronous>, transform_indices = @transform_7, window_bounds = array<i64: 8, 1>}, {pipeline_mode = #tpu.pipeline_mode<synchronous>, transform_indices = @transform_8, window_bounds = array<i64: 8, 1>}, {transform_indices = @transform_9, window_bounds = array<i64: 1, 8, 256>}]} {
    %cst = arith.constant 0.000000e+00 : f32
    %0 = vector.broadcast %cst : f32 to vector<1x1xf32>
    %c0_i32 = arith.constant 0 : i32
    %c2_i32 = arith.constant 2 : i32
    %1 = arith.addi %c0_i32, %c2_i32 : i32
    %c1_i32 = arith.constant 1 : i32
    %2 = scf.for %arg13 = %c0_i32 to %1 step %c1_i32 iter_args(%arg14 = %0) -> (vector<1x1xf32>)  : i32 {
      %c128_i32 = arith.constant 128 : i32
      %38 = arith.muli %arg13, %c128_i32 : i32
      %39 = tpu.assume_multiple %38, 128 : i32
      %c0_30 = arith.constant 0 : index
      %c0_31 = arith.constant 0 : index
      %40 = arith.index_cast %39 : i32 to index
      %41 = vector.load %arg1[%c0_30, %c0_31, %40] : memref<1x4x256xf32, #tpu.memory_space<vmem>>, vector<1x4x128xf32>
      %42 = vector.shape_cast %41 : vector<1x4x128xf32> to vector<4x128xf32>
      %c0_32 = arith.constant 0 : index
      %c0_33 = arith.constant 0 : index
      %43 = vector.load %arg2[%c0_32, %c0_33] : memref<32x4xf32, #tpu.memory_space<vmem>>, vector<32x4xf32>
      %cst_34 = arith.constant dense<0.000000e+00> : vector<32x128xf32>
      %44 = tpu.matmul %43, %42, %cst_34 {dimension_numbers = #tpu.dot_dimension_numbers<[1], [0], [0], [1], [0, 0, 1, 1], [], []>} : vector<32x4xf32>, vector<4x128xf32>, vector<32x128xf32> -> vector<32x128xf32>
      %c0_35 = arith.constant 0 : index
      %c0_36 = arith.constant 0 : index
      %45 = vector.load %arg3[%c0_35, %c0_36] : memref<32x1xf32, #tpu.memory_space<vmem>>, vector<32x1xf32>
      %46 = vector.broadcast %45 : vector<32x1xf32> to vector<32x128xf32>
      %47 = arith.addf %44, %46 : vector<32x128xf32>
      %c0_37 = arith.constant 0 : index
      %48 = arith.index_cast %39 : i32 to index
      %49 = vector.load %arg11[%c0_37, %48] : memref<32x256xf32, #tpu.memory_space<vmem>>, vector<32x128xf32>
      tpu.vector_store %arg11[%c0_37, %48], %47 {strides = array<i32>} : memref<32x256xf32, #tpu.memory_space<vmem>>, vector<32x128xf32>,
      %50 = vector.shape_cast %47 : vector<32x128xf32> to vector<1x32x128xf32>
      %cst_38 = arith.constant dense<0.000000e+00> : vector<1xf32>
      %51 = vector.multi_reduction <add>, %50, %cst_38 [1, 2] : vector<1x32x128xf32> to vector<1xf32>
      %52 = vector.shape_cast %51 : vector<1xf32> to vector<1x1x1xf32>
      %53 = vector.extract %52[0, 0, 0] : f32 from vector<1x1x1xf32>
      %54 = vector.broadcast %53 : f32 to vector<1x1xf32>
      %55 = arith.addf %arg14, %54 : vector<1x1xf32>
      scf.yield %55 : vector<1x1xf32>
    }
    %c2_i32_0 = arith.constant 2 : i32
    %cst_1 = arith.constant 1.22070313E-4 : f32
    %3 = vector.broadcast %cst_1 : f32 to vector<1x1xf32>
    %4 = arith.mulf %2, %3 : vector<1x1xf32>
    %c0_i32_2 = arith.constant 0 : i32
    %c2_i32_3 = arith.constant 2 : i32
    %5 = arith.addi %c0_i32_2, %c2_i32_3 : i32
    %c1_i32_4 = arith.constant 1 : i32
    %6 = scf.for %arg13 = %c0_i32_2 to %5 step %c1_i32_4 iter_args(%arg14 = %0) -> (vector<1x1xf32>)  : i32 {
      %c128_i32 = arith.constant 128 : i32
      %38 = arith.muli %arg13, %c128_i32 : i32
      %39 = tpu.assume_multiple %38, 128 : i32
      %c0_30 = arith.constant 0 : index
      %40 = arith.index_cast %39 : i32 to index
      %41 = vector.load %arg11[%c0_30, %40] : memref<32x256xf32, #tpu.memory_space<vmem>>, vector<32x128xf32>
      %42 = vector.broadcast %4 : vector<1x1xf32> to vector<32x128xf32>
      %43 = arith.subf %41, %42 : vector<32x128xf32>
      %44 = arith.mulf %43, %43 : vector<32x128xf32>
      %45 = vector.shape_cast %44 : vector<32x128xf32> to vector<1x32x128xf32>
      %cst_31 = arith.constant dense<0.000000e+00> : vector<1xf32>
      %46 = vector.multi_reduction <add>, %45, %cst_31 [1, 2] : vector<1x32x128xf32> to vector<1xf32>
      %47 = vector.shape_cast %46 : vector<1xf32> to vector<1x1x1xf32>
      %48 = vector.extract %47[0, 0, 0] : f32 from vector<1x1x1xf32>
      %49 = vector.broadcast %48 : f32 to vector<1x1xf32>
      %50 = arith.addf %arg14, %49 : vector<1x1xf32>
      scf.yield %50 : vector<1x1xf32>
    }
    %c2_i32_5 = arith.constant 2 : i32
    %cst_6 = arith.constant 1.22070313E-4 : f32
    %7 = vector.broadcast %cst_6 : f32 to vector<1x1xf32>
    %8 = arith.mulf %6, %7 : vector<1x1xf32>
    %cst_7 = arith.constant 9.99999974E-6 : f32
    %9 = vector.broadcast %cst_7 : f32 to vector<1x1xf32>
    %10 = arith.addf %8, %9 : vector<1x1xf32>
    %11 = math.rsqrt %10 : vector<1x1xf32>
    %c0 = arith.constant 0 : index
    %c0_8 = arith.constant 0 : index
    %12 = vector.load %arg4[%c0, %c0_8] : memref<32x1xf32, #tpu.memory_space<vmem>>, vector<32x1xf32>
    %13 = vector.broadcast %11 : vector<1x1xf32> to vector<32x1xf32>
    %14 = arith.mulf %12, %13 : vector<32x1xf32>
    %c0_9 = arith.constant 0 : index
    %c0_10 = arith.constant 0 : index
    %15 = vector.load %arg5[%c0_9, %c0_10] : memref<32x1xf32, #tpu.memory_space<vmem>>, vector<32x1xf32>
    %16 = vector.broadcast %4 : vector<1x1xf32> to vector<32x1xf32>
    %17 = arith.mulf %16, %14 : vector<32x1xf32>
    %18 = arith.subf %15, %17 : vector<32x1xf32>
    %c0_i32_11 = arith.constant 0 : i32
    %c2_i32_12 = arith.constant 2 : i32
    %19 = arith.addi %c0_i32_11, %c2_i32_12 : i32
    %c1_i32_13 = arith.constant 1 : i32
    %20 = scf.for %arg13 = %c0_i32_11 to %19 step %c1_i32_13 iter_args(%arg14 = %0) -> (vector<1x1xf32>)  : i32 {
      %c128_i32 = arith.constant 128 : i32
      %38 = arith.muli %arg13, %c128_i32 : i32
      %39 = tpu.assume_multiple %38, 128 : i32
      %c0_30 = arith.constant 0 : index
      %40 = arith.index_cast %39 : i32 to index
      %41 = vector.load %arg11[%c0_30, %40] : memref<32x256xf32, #tpu.memory_space<vmem>>, vector<32x128xf32>
      %42 = vector.broadcast %14 : vector<32x1xf32> to vector<32x128xf32>
      %43 = arith.mulf %41, %42 : vector<32x128xf32>
      %44 = vector.broadcast %18 : vector<32x1xf32> to vector<32x128xf32>
      %45 = arith.addf %43, %44 : vector<32x128xf32>
      %cst_31 = arith.constant 5.000000e-01 : f32
      %46 = vector.broadcast %cst_31 : f32 to vector<32x128xf32>
      %47 = arith.mulf %46, %45 : vector<32x128xf32>
      %cst_32 = arith.constant 0.707106769 : f32
      %48 = vector.broadcast %cst_32 : f32 to vector<32x128xf32>
      %49 = arith.mulf %45, %48 : vector<32x128xf32>
      %50 = math.erf %49 : vector<32x128xf32>
      %cst_33 = arith.constant 1.000000e+00 : f32
      %51 = vector.broadcast %cst_33 : f32 to vector<32x128xf32>
      %52 = arith.addf %51, %50 : vector<32x128xf32>
      %53 = arith.mulf %47, %52 : vector<32x128xf32>
      %c0_34 = arith.constant 0 : index
      %c0_35 = arith.constant 0 : index
      %54 = vector.load %arg6[%c0_34, %c0_35] : memref<8x32xf32, #tpu.memory_space<vmem>>, vector<8x32xf32>
      %cst_36 = arith.constant dense<0.000000e+00> : vector<8x128xf32>
      %55 = tpu.matmul %54, %53, %cst_36 {dimension_numbers = #tpu.dot_dimension_numbers<[1], [0], [0], [1], [0, 0, 1, 1], [], []>} : vector<8x32xf32>, vector<32x128xf32>, vector<8x128xf32> -> vector<8x128xf32>
      %c0_37 = arith.constant 0 : index
      %c0_38 = arith.constant 0 : index
      %56 = vector.load %arg7[%c0_37, %c0_38] : memref<8x1xf32, #tpu.memory_space<vmem>>, vector<8x1xf32>
      %57 = vector.broadcast %56 : vector<8x1xf32> to vector<8x128xf32>
      %58 = arith.addf %55, %57 : vector<8x128xf32>
      %c0_39 = arith.constant 0 : index
      %59 = arith.index_cast %39 : i32 to index
      %60 = vector.load %arg12[%c0_39, %59] : memref<8x256xf32, #tpu.memory_space<vmem>>, vector<8x128xf32>
      tpu.vector_store %arg12[%c0_39, %59], %58 {strides = array<i32>} : memref<8x256xf32, #tpu.memory_space<vmem>>, vector<8x128xf32>,
      %61 = vector.shape_cast %58 : vector<8x128xf32> to vector<1x8x128xf32>
      %cst_40 = arith.constant dense<0.000000e+00> : vector<1xf32>
      %62 = vector.multi_reduction <add>, %61, %cst_40 [1, 2] : vector<1x8x128xf32> to vector<1xf32>
      %63 = vector.shape_cast %62 : vector<1xf32> to vector<1x1x1xf32>
      %64 = vector.extract %63[0, 0, 0] : f32 from vector<1x1x1xf32>
      %65 = vector.broadcast %64 : f32 to vector<1x1xf32>
      %66 = arith.addf %arg14, %65 : vector<1x1xf32>
      scf.yield %66 : vector<1x1xf32>
    }
    %c2_i32_14 = arith.constant 2 : i32
    %cst_15 = arith.constant 4.8828125E-4 : f32
    %21 = vector.broadcast %cst_15 : f32 to vector<1x1xf32>
    %22 = arith.mulf %20, %21 : vector<1x1xf32>
    %c0_i32_16 = arith.constant 0 : i32
    %c2_i32_17 = arith.constant 2 : i32
    %23 = arith.addi %c0_i32_16, %c2_i32_17 : i32
    %c1_i32_18 = arith.constant 1 : i32
    %24 = scf.for %arg13 = %c0_i32_16 to %23 step %c1_i32_18 iter_args(%arg14 = %0) -> (vector<1x1xf32>)  : i32 {
      %c128_i32 = arith.constant 128 : i32
      %38 = arith.muli %arg13, %c128_i32 : i32
      %39 = tpu.assume_multiple %38, 128 : i32
      %c0_30 = arith.constant 0 : index
      %40 = arith.index_cast %39 : i32 to index
      %41 = vector.load %arg12[%c0_30, %40] : memref<8x256xf32, #tpu.memory_space<vmem>>, vector<8x128xf32>
      %42 = vector.broadcast %22 : vector<1x1xf32> to vector<8x128xf32>
      %43 = arith.subf %41, %42 : vector<8x128xf32>
      %44 = arith.mulf %43, %43 : vector<8x128xf32>
      %45 = vector.shape_cast %44 : vector<8x128xf32> to vector<1x8x128xf32>
      %cst_31 = arith.constant dense<0.000000e+00> : vector<1xf32>
      %46 = vector.multi_reduction <add>, %45, %cst_31 [1, 2] : vector<1x8x128xf32> to vector<1xf32>
      %47 = vector.shape_cast %46 : vector<1xf32> to vector<1x1x1xf32>
      %48 = vector.extract %47[0, 0, 0] : f32 from vector<1x1x1xf32>
      %49 = vector.broadcast %48 : f32 to vector<1x1xf32>
      %50 = arith.addf %arg14, %49 : vector<1x1xf32>
      scf.yield %50 : vector<1x1xf32>
    }
    %c2_i32_19 = arith.constant 2 : i32
    %cst_20 = arith.constant 4.8828125E-4 : f32
    %25 = vector.broadcast %cst_20 : f32 to vector<1x1xf32>
    %26 = arith.mulf %24, %25 : vector<1x1xf32>
    %cst_21 = arith.constant 9.99999974E-6 : f32
    %27 = vector.broadcast %cst_21 : f32 to vector<1x1xf32>
    %28 = arith.addf %26, %27 : vector<1x1xf32>
    %29 = math.rsqrt %28 : vector<1x1xf32>
    %c0_22 = arith.constant 0 : index
    %c0_23 = arith.constant 0 : index
    %30 = vector.load %arg8[%c0_22, %c0_23] : memref<8x1xf32, #tpu.memory_space<vmem>>, vector<8x1xf32>
    %31 = vector.broadcast %29 : vector<1x1xf32> to vector<8x1xf32>
    %32 = arith.mulf %30, %31 : vector<8x1xf32>
    %c0_24 = arith.constant 0 : index
    %c0_25 = arith.constant 0 : index
    %33 = vector.load %arg9[%c0_24, %c0_25] : memref<8x1xf32, #tpu.memory_space<vmem>>, vector<8x1xf32>
    %34 = vector.broadcast %22 : vector<1x1xf32> to vector<8x1xf32>
    %35 = arith.mulf %34, %32 : vector<8x1xf32>
    %36 = arith.subf %33, %35 : vector<8x1xf32>
    %c0_i32_26 = arith.constant 0 : i32
    %c2_i32_27 = arith.constant 2 : i32
    %37 = arith.addi %c0_i32_26, %c2_i32_27 : i32
    %c1_i32_28 = arith.constant 1 : i32
    scf.for %arg13 = %c0_i32_26 to %37 step %c1_i32_28  : i32 {
      %c128_i32 = arith.constant 128 : i32
      %38 = arith.muli %arg13, %c128_i32 : i32
      %39 = tpu.assume_multiple %38, 128 : i32
      %c0_30 = arith.constant 0 : index
      %40 = arith.index_cast %39 : i32 to index
      %41 = vector.load %arg12[%c0_30, %40] : memref<8x256xf32, #tpu.memory_space<vmem>>, vector<8x128xf32>
      %42 = vector.broadcast %32 : vector<8x1xf32> to vector<8x128xf32>
      %43 = arith.mulf %41, %42 : vector<8x128xf32>
      %44 = vector.broadcast %36 : vector<8x1xf32> to vector<8x128xf32>
      %45 = arith.addf %43, %44 : vector<8x128xf32>
      %c0_31 = arith.constant 0 : index
      %c0_32 = arith.constant 0 : index
      %46 = arith.index_cast %39 : i32 to index
      %47 = vector.load %arg10[%c0_31, %c0_32, %46] : memref<1x8x256xf32, #tpu.memory_space<vmem>>, vector<1x8x128xf32>
      %48 = vector.shape_cast %47 : vector<1x8x128xf32> to vector<8x128xf32>
      %49 = vector.shape_cast %45 : vector<8x128xf32> to vector<1x8x128xf32>
      tpu.vector_store %arg10[%c0_31, %c0_32, %46], %49 {strides = array<i32>} : memref<1x8x256xf32, #tpu.memory_space<vmem>>, vector<1x8x128xf32>,
    }
    %c2_i32_29 = arith.constant 2 : i32
    return
  }
  func.func @transform_0(%arg0: i32) -> (i32, i32, i32) {
    %c0_i32 = arith.constant 0 : i32
    %c0_i32_0 = arith.constant 0 : i32
    %c0_i32_1 = arith.constant 0 : i32
    return %arg0, %c0_i32, %c0_i32_0 : i32, i32, i32
  }
  func.func @transform_1(%arg0: i32) -> (i32, i32) {
    %c0_i32 = arith.constant 0 : i32
    %c0_i32_0 = arith.constant 0 : i32
    %c0_i32_1 = arith.constant 0 : i32
    return %c0_i32, %c0_i32_0 : i32, i32
  }
  func.func @transform_2(%arg0: i32) -> (i32, i32) {
    %c0_i32 = arith.constant 0 : i32
    %c0_i32_0 = arith.constant 0 : i32
    %c0_i32_1 = arith.constant 0 : i32
    return %c0_i32, %c0_i32_0 : i32, i32
  }
  func.func @transform_3(%arg0: i32) -> (i32, i32) {
    %c0_i32 = arith.constant 0 : i32
    %c0_i32_0 = arith.constant 0 : i32
    %c0_i32_1 = arith.constant 0 : i32
    return %c0_i32, %c0_i32_0 : i32, i32
  }
  func.func @transform_4(%arg0: i32) -> (i32, i32) {
    %c0_i32 = arith.constant 0 : i32
    %c0_i32_0 = arith.constant 0 : i32
    %c0_i32_1 = arith.constant 0 : i32
    return %c0_i32, %c0_i32_0 : i32, i32
  }
  func.func @transform_5(%arg0: i32) -> (i32, i32) {
    %c0_i32 = arith.constant 0 : i32
    %c0_i32_0 = arith.constant 0 : i32
    %c0_i32_1 = arith.constant 0 : i32
    return %c0_i32, %c0_i32_0 : i32, i32
  }
  func.func @transform_6(%arg0: i32) -> (i32, i32) {
    %c0_i32 = arith.constant 0 : i32
    %c0_i32_0 = arith.constant 0 : i32
    %c0_i32_1 = arith.constant 0 : i32
    return %c0_i32, %c0_i32_0 : i32, i32
  }
  func.func @transform_7(%arg0: i32) -> (i32, i32) {
    %c0_i32 = arith.constant 0 : i32
    %c0_i32_0 = arith.constant 0 : i32
    %c0_i32_1 = arith.constant 0 : i32
    return %c0_i32, %c0_i32_0 : i32, i32
  }
  func.func @transform_8(%arg0: i32) -> (i32, i32) {
    %c0_i32 = arith.constant 0 : i32
    %c0_i32_0 = arith.constant 0 : i32
    %c0_i32_1 = arith.constant 0 : i32
    return %c0_i32, %c0_i32_0 : i32, i32
  }
  func.func @transform_9(%arg0: i32) -> (i32, i32, i32) {
    %c0_i32 = arith.constant 0 : i32
    %c0_i32_0 = arith.constant 0 : i32
    %c0_i32_1 = arith.constant 0 : i32
    return %arg0, %c0_i32, %c0_i32_0 : i32, i32, i32
  }
}

</mosaic_0001>

<llo_original>
// kernel: mlp1d_forward.1
$region0: #{mlp1d_forward.1}
  #allocation0 [shape = 'u32[]', space=smem, size = 0x4, offset = 0x4, fixed_abs, tag = 'smem constant byte address 0x4 - core index']
  #allocation1 [shape = 'u32[144,128]{1,0:T(1,128)}', space=vmem, size = 0x12000, scoped, tag = 'internal scratch']
  #allocation2 [shape = 'f32[32,256]{1,0:T(8,128)}', space=vmem, size = 0x8000, scoped, tag = 'scratch operand']
  #allocation3 [shape = 'f32[8,256]{1,0:T(8,128)}', space=vmem, size = 0x2000, scoped, tag = 'scratch operand']
  %s0 = inlined_call_operand.vmem [shape: f32[2,4,256], index: 0, kind: input, shape index: {}]
  %s1 = inlined_call_operand.vmem [shape: f32[32,4], index: 1, kind: input, shape index: {}]
  %s2 = inlined_call_operand.vmem [shape: f32[32,1], index: 2, kind: input, shape index: {}]
  %s3 = inlined_call_operand.vmem [shape: f32[32,1], index: 3, kind: input, shape index: {}]
  %s4 = inlined_call_operand.vmem [shape: f32[32,1], index: 4, kind: input, shape index: {}]
  %s5 = inlined_call_operand.vmem [shape: f32[8,32], index: 5, kind: input, shape index: {}]
  %s6 = inlined_call_operand.vmem [shape: f32[8,1], index: 6, kind: input, shape index: {}]
  %s7 = inlined_call_operand.vmem [shape: f32[8,1], index: 7, kind: input, shape index: {}]
  %s8 = inlined_call_operand.vmem [shape: f32[8,1], index: 8, kind: input, shape index: {}]
  %s9 = inlined_call_operand.hbm [shape: f32[2,8,256], index: 9, kind: output, shape index: {}]
  %s10 = sld [smem:[#allocation0]]
  $region104: #{mlp1d_forward.1} parent=0
    _
  %s12 = ssub.s32 1, %s10
  %s13 = scalar_select 0, %s12, %s10
  $region1: #{mlp1d_forward.1} parent=0
    #allocation4 [shape = 'u8[16384]{0}', space=vmem, size = 0x4000, scoped, tag = 'output window, operand 0']
    #allocation5 [shape = 's32[2]{0}', space=sflag, size = 0x8, scoped, tag = 'scoped memory for mlp1d_forward.1']
    %14 = vsyncpa [#allocation5], 0
    %s15 = scalar_lea.sflag [#allocation5], 1
    %16 = vsyncpa %s15, 0
    loop: start=0, step=1, limit=4
    $region2: #{mlp1d_forward.1} parent=1 // loop_pre_header
      _
    $region3: #{mlp1d_forward.1} parent=1 // loop_header
      %s18 = sphi 0, %s22
      %p19 = scmp.ge.s32.totalorder %s18, 4
      %s28 = sphi 0, %s30
      %s31 = sphi 0, %s28
      %s32 = sphi 0, %s31
      %s48 = sphi 0, %s32
      %s52 = sphi 0, %s52
      %s54 = sphi 0, %s52
      %s55 = sphi 0, %s54
      %s69 = sphi 0, %s55
      %s73 = sphi 0, %s73
      %s75 = sphi 0, %s73
      %s76 = sphi 0, %s75
      %s90 = sphi 0, %s76
      %s94 = sphi 0, %s94
      %s96 = sphi 0, %s94
      %s97 = sphi 0, %s96
      %s111 = sphi 0, %s97
      %s115 = sphi 0, %s115
      %s117 = sphi 0, %s115
      %s118 = sphi 0, %s117
      %s132 = sphi 0, %s118
      %s136 = sphi 0, %s136
      %s138 = sphi 0, %s136
      %s139 = sphi 0, %s138
      %s153 = sphi 0, %s139
      %s157 = sphi 0, %s157
      %s159 = sphi 0, %s157
      %s160 = sphi 0, %s159
      %s174 = sphi 0, %s160
      %s178 = sphi 0, %s178
      %s180 = sphi 0, %s178
      %s181 = sphi 0, %s180
      %s195 = sphi 0, %s181
      %s199 = sphi 0, %s199
      %s201 = sphi 0, %s199
      %s202 = sphi 0, %s201
      %s216 = sphi 0, %s202
      %s222 = sphi 0, %s224
      %s225 = sphi 0, %s222
      %s226 = sphi 0, %s225
      %s242 = sphi 0, %s226
    $region4: #{mlp1d_forward.1} parent=1 // loop_header_branch
      %21 = sbr.rel (%p19) target = $region8
    $region5: #{mlp1d_forward.1} parent=1 // loop_body
      %s23 = ssub.s32 %s18, 1
      %s24 = ssub.s32 %s18, 2
      %s25 = sadd.s32 %s18, 1
      %s26 = ssub.s32 %s18, %s25
      %p27 = scmp.eq.s32.totalorder %s26, 0
      %s29 = sadd.s32 %s28, 1
      %s30 = scalar_select %p27, %s28, %s29
      %p33 = pneg %p27
      %p34 = scmp.eq.s32.totalorder %s18, 1
      %p35 = por %p33, %p34
      %p36 = scmp.ne.s32.totalorder %s28, %s31
      %p37 = scmp.eq.s32.totalorder %s18, 0
      %p38 = por %p36, %p37
      %p39 = scmp.ne.s32.totalorder %s28, %s31
      %p40 = scmp.eq.s32.totalorder %s23, 1
      %p41 = por %p39, %p40
      %p42 = scmp.ne.s32.totalorder %s31, %s32
      %p43 = scmp.eq.s32.totalorder %s23, 0
      %p44 = por %p42, %p43
      %p45 = scmp.ne.s32.totalorder %s31, %s32
      %p46 = scmp.eq.s32.totalorder %s24, 1
      %p47 = por %p45, %p46
      %p49 = scmp.ne.s32.totalorder %s32, %s48
      %p50 = scmp.eq.s32.totalorder %s24, 0
      %p51 = por %p49, %p50
      %s53 = sadd.s32 %s52, 1
      %p56 = scmp.eq.s32.totalorder %s18, 1
      %p57 = scmp.ne.s32.totalorder %s52, %s54
      %p58 = scmp.eq.s32.totalorder %s18, 0
      %p59 = por %p57, %p58
      %p60 = scmp.ne.s32.totalorder %s52, %s54
      %p61 = scmp.eq.s32.totalorder %s23, 1
      %p62 = por %p60, %p61
      %p63 = scmp.ne.s32.totalorder %s54, %s55
      %p64 = scmp.eq.s32.totalorder %s23, 0
      %p65 = por %p63, %p64
      %p66 = scmp.ne.s32.totalorder %s54, %s55
      %p67 = scmp.eq.s32.totalorder %s24, 1
      %p68 = por %p66, %p67
      %p70 = scmp.ne.s32.totalorder %s55, %s69
      %p71 = scmp.eq.s32.totalorder %s24, 0
      %p72 = por %p70, %p71
      %s74 = sadd.s32 %s73, 1
      %p77 = scmp.eq.s32.totalorder %s18, 1
      %p78 = scmp.ne.s32.totalorder %s73, %s75
      %p79 = scmp.eq.s32.totalorder %s18, 0
      %p80 = por %p78, %p79
      %p81 = scmp.ne.s32.totalorder %s73, %s75
      %p82 = scmp.eq.s32.totalorder %s23, 1
      %p83 = por %p81, %p82
      %p84 = scmp.ne.s32.totalorder %s75, %s76
      %p85 = scmp.eq.s32.totalorder %s23, 0
      %p86 = por %p84, %p85
      %p87 = scmp.ne.s32.totalorder %s75, %s76
      %p88 = scmp.eq.s32.totalorder %s24, 1
      %p89 = por %p87, %p88
      %p91 = scmp.ne.s32.totalorder %s76, %s90
      %p92 = scmp.eq.s32.totalorder %s24, 0
      %p93 = por %p91, %p92
      %s95 = sadd.s32 %s94, 1
      %p98 = scmp.eq.s32.totalorder %s18, 1
      %p99 = scmp.ne.s32.totalorder %s94, %s96
      %p100 = scmp.eq.s32.totalorder %s18, 0
      %p101 = por %p99, %p100
      %p102 = scmp.ne.s32.totalorder %s94, %s96
      %p103 = scmp.eq.s32.totalorder %s23, 1
      %p104 = por %p102, %p103
      %p105 = scmp.ne.s32.totalorder %s96, %s97
      %p106 = scmp.eq.s32.totalorder %s23, 0
      %p107 = por %p105, %p106
      %p108 = scmp.ne.s32.totalorder %s96, %s97
      %p109 = scmp.eq.s32.totalorder %s24, 1
      %p110 = por %p108, %p109
      %p112 = scmp.ne.s32.totalorder %s97, %s111
      %p113 = scmp.eq.s32.totalorder %s24, 0
      %p114 = por %p112, %p113
      %s116 = sadd.s32 %s115, 1
      %p119 = scmp.eq.s32.totalorder %s18, 1
      %p120 = scmp.ne.s32.totalorder %s115, %s117
      %p121 = scmp.eq.s32.totalorder %s18, 0
      %p122 = por %p120, %p121
      %p123 = scmp.ne.s32.totalorder %s115, %s117
      %p124 = scmp.eq.s32.totalorder %s23, 1
      %p125 = por %p123, %p124
      %p126 = scmp.ne.s32.totalorder %s117, %s118
      %p127 = scmp.eq.s32.totalorder %s23, 0
      %p128 = por %p126, %p127
      %p129 = scmp.ne.s32.totalorder %s117, %s118
      %p130 = scmp.eq.s32.totalorder %s24, 1
      %p131 = por %p129, %p130
      %p133 = scmp.ne.s32.totalorder %s118, %s132
      %p134 = scmp.eq.s32.totalorder %s24, 0
      %p135 = por %p133, %p134
      %s137 = sadd.s32 %s136, 1
      %p140 = scmp.eq.s32.totalorder %s18, 1
      %p141 = scmp.ne.s32.totalorder %s136, %s138
      %p142 = scmp.eq.s32.totalorder %s18, 0
      %p143 = por %p141, %p142
      %p144 = scmp.ne.s32.totalorder %s136, %s138
      %p145 = scmp.eq.s32.totalorder %s23, 1
      %p146 = por %p144, %p145
      %p147 = scmp.ne.s32.totalorder %s138, %s139
      %p148 = scmp.eq.s32.totalorder %s23, 0
      %p149 = por %p147, %p148
      %p150 = scmp.ne.s32.totalorder %s138, %s139
      %p151 = scmp.eq.s32.totalorder %s24, 1
      %p152 = por %p150, %p151
      %p154 = scmp.ne.s32.totalorder %s139, %s153
      %p155 = scmp.eq.s32.totalorder %s24, 0
      %p156 = por %p154, %p155
      %s158 = sadd.s32 %s157, 1
      %p161 = scmp.eq.s32.totalorder %s18, 1
      %p162 = scmp.ne.s32.totalorder %s157, %s159
      %p163 = scmp.eq.s32.totalorder %s18, 0
      %p164 = por %p162, %p163
      %p165 = scmp.ne.s32.totalorder %s157, %s159
      %p166 = scmp.eq.s32.totalorder %s23, 1
      %p167 = por %p165, %p166
      %p168 = scmp.ne.s32.totalorder %s159, %s160
      %p169 = scmp.eq.s32.totalorder %s23, 0
      %p170 = por %p168, %p169
      %p171 = scmp.ne.s32.totalorder %s159, %s160
      %p172 = scmp.eq.s32.totalorder %s24, 1
      %p173 = por %p171, %p172
      %p175 = scmp.ne.s32.totalorder %s160, %s174
      %p176 = scmp.eq.s32.totalorder %s24, 0
      %p177 = por %p175, %p176
      %s179 = sadd.s32 %s178, 1
      %p182 = scmp.eq.s32.totalorder %s18, 1
      %p183 = scmp.ne.s32.totalorder %s178, %s180
      %p184 = scmp.eq.s32.totalorder %s18, 0
      %p185 = por %p183, %p184
      %p186 = scmp.ne.s32.totalorder %s178, %s180
      %p187 = scmp.eq.s32.totalorder %s23, 1
      %p188 = por %p186, %p187
      %p189 = scmp.ne.s32.totalorder %s180, %s181
      %p190 = scmp.eq.s32.totalorder %s23, 0
      %p191 = por %p189, %p190
      %p192 = scmp.ne.s32.totalorder %s180, %s181
      %p193 = scmp.eq.s32.totalorder %s24, 1
      %p194 = por %p192, %p193
      %p196 = scmp.ne.s32.totalorder %s181, %s195
      %p197 = scmp.eq.s32.totalorder %s24, 0
      %p198 = por %p196, %p197
      %s200 = sadd.s32 %s199, 1
      %p203 = scmp.eq.s32.totalorder %s18, 1
      %p204 = scmp.ne.s32.totalorder %s199, %s201
      %p205 = scmp.eq.s32.totalorder %s18, 0
      %p206 = por %p204, %p205
      %p207 = scmp.ne.s32.totalorder %s199, %s201
      %p208 = scmp.eq.s32.totalorder %s23, 1
      %p209 = por %p207, %p208
      %p210 = scmp.ne.s32.totalorder %s201, %s202
      %p211 = scmp.eq.s32.totalorder %s23, 0
      %p212 = por %p210, %p211
      %p213 = scmp.ne.s32.totalorder %s201, %s202
      %p214 = scmp.eq.s32.totalorder %s24, 1
      %p215 = por %p213, %p214
      %p217 = scmp.ne.s32.totalorder %s202, %s216
      %p218 = scmp.eq.s32.totalorder %s24, 0
      %p219 = por %p217, %p218
      %s220 = ssub.s32 %s18, %s25
      %p221 = scmp.eq.s32.totalorder %s220, 0
      %s223 = sadd.s32 %s222, 1
      %s224 = scalar_select %p221, %s222, %s223
      %p227 = pneg %p221
      %p228 = scmp.eq.s32.totalorder %s18, 1
      %p229 = por %p227, %p228
      %p230 = scmp.ne.s32.totalorder %s222, %s225
      %p231 = scmp.eq.s32.totalorder %s18, 0
      %p232 = por %p230, %p231
      %p233 = scmp.ne.s32.totalorder %s222, %s225
      %p234 = scmp.eq.s32.totalorder %s23, 1
      %p235 = por %p233, %p234
      %p236 = scmp.ne.s32.totalorder %s225, %s226
      %p237 = scmp.eq.s32.totalorder %s23, 0
      %p238 = por %p236, %p237
      %p239 = scmp.ne.s32.totalorder %s225, %s226
      %p240 = scmp.eq.s32.totalorder %s24, 1
      %p241 = por %p239, %p240
      %p243 = scmp.ne.s32.totalorder %s226, %s242
      %p244 = scmp.eq.s32.totalorder %s24, 0
      %p245 = por %p243, %p244
      %p246 = scmp.le.s32.totalorder 1, %s18
      %p247 = scmp.lt.s32.totalorder %s18, 3
      %p248 = pnand %p246, %p247
      %p249 = pneg %p248
      // Predicated region
      $region9: #{mlp1d_forward.1} parent=5 // pred_check
        _
      $region10: #{mlp1d_forward.1} parent=5 // pred_check_branch
        %251 = sbr.rel (%p248) target = $region12
      $region11: #{mlp1d_forward.1} parent=5 // pred_region
        %s252 = ssub.s32 %s18, 1
        // Predicated region
        $region13: #{mlp1d_forward.1} parent=11 // pred_check
          %p253 = pneg %p65
        $region14: #{mlp1d_forward.1} parent=11 // pred_check_branch
          %255 = sbr.rel (%p253) target = $region16
        $region15: #{mlp1d_forward.1} parent=11 // pred_region
          _
        $region16: #{mlp1d_forward.1} parent=11 // pred_fallthru
          _
        // Predicated region
        $region17: #{mlp1d_forward.1} parent=11 // pred_check
          %p256 = pneg %p86
        $region18: #{mlp1d_forward.1} parent=11 // pred_check_branch
          %258 = sbr.rel (%p256) target = $region20
        $region19: #{mlp1d_forward.1} parent=11 // pred_region
          _
        $region20: #{mlp1d_forward.1} parent=11 // pred_fallthru
          _
        // Predicated region
        $region21: #{mlp1d_forward.1} parent=11 // pred_check
          %p259 = pneg %p107
        $region22: #{mlp1d_forward.1} parent=11 // pred_check_branch
          %261 = sbr.rel (%p259) target = $region24
        $region23: #{mlp1d_forward.1} parent=11 // pred_region
          _
        $region24: #{mlp1d_forward.1} parent=11 // pred_fallthru
          _
        // Predicated region
        $region25: #{mlp1d_forward.1} parent=11 // pred_check
          %p262 = pneg %p128
        $region26: #{mlp1d_forward.1} parent=11 // pred_check_branch
          %264 = sbr.rel (%p262) target = $region28
        $region27: #{mlp1d_forward.1} parent=11 // pred_region
          _
        $region28: #{mlp1d_forward.1} parent=11 // pred_fallthru
          _
        // Predicated region
        $region29: #{mlp1d_forward.1} parent=11 // pred_check
          %p265 = pneg %p149
        $region30: #{mlp1d_forward.1} parent=11 // pred_check_branch
          %267 = sbr.rel (%p265) target = $region32
        $region31: #{mlp1d_forward.1} parent=11 // pred_region
          _
        $region32: #{mlp1d_forward.1} parent=11 // pred_fallthru
          _
        // Predicated region
        $region33: #{mlp1d_forward.1} parent=11 // pred_check
          %p268 = pneg %p170
        $region34: #{mlp1d_forward.1} parent=11 // pred_check_branch
          %270 = sbr.rel (%p268) target = $region36
        $region35: #{mlp1d_forward.1} parent=11 // pred_region
          _
        $region36: #{mlp1d_forward.1} parent=11 // pred_fallthru
          _
        // Predicated region
        $region37: #{mlp1d_forward.1} parent=11 // pred_check
          %p271 = pneg %p191
        $region38: #{mlp1d_forward.1} parent=11 // pred_check_branch
          %273 = sbr.rel (%p271) target = $region40
        $region39: #{mlp1d_forward.1} parent=11 // pred_region
          _
        $region40: #{mlp1d_forward.1} parent=11 // pred_fallthru
          _
        // Predicated region
        $region41: #{mlp1d_forward.1} parent=11 // pred_check
          %p274 = pneg %p212
        $region42: #{mlp1d_forward.1} parent=11 // pred_check_branch
          %276 = sbr.rel (%p274) target = $region44
        $region43: #{mlp1d_forward.1} parent=11 // pred_region
          _
        $region44: #{mlp1d_forward.1} parent=11 // pred_fallthru
          _
      $region12: #{mlp1d_forward.1} parent=5 // pred_fallthru
        _
      %p277 = scmp.lt.s32.totalorder %s18, 2
      // Predicated region
      $region45: #{mlp1d_forward.1} parent=5 // pred_check
        %p278 = pneg %p277
      $region46: #{mlp1d_forward.1} parent=5 // pred_check_branch
        %280 = sbr.rel (%p278) target = $region48
      $region47: #{mlp1d_forward.1} parent=5 // pred_region
        // Predicated region
        $region49: #{mlp1d_forward.1} parent=47 // pred_check
          %p281 = pneg %p38
        $region50: #{mlp1d_forward.1} parent=47 // pred_check_branch
          %283 = sbr.rel (%p281) target = $region52
        $region51: #{mlp1d_forward.1} parent=47 // pred_region
          %p284 = scmp.lt.s32.totalorder %s18, 1
          %s285 = scalar_select %p284, %s18, 1
          %s286 = smul.addr %s285, 2
          %s287 = smul.addr %s286, 4
          %s288 = scalar_lea.vmem %s0, %s287
        $region52: #{mlp1d_forward.1} parent=47 // pred_fallthru
          _
      $region48: #{mlp1d_forward.1} parent=5 // pred_fallthru
        _
      %p289 = scmp.le.s32.totalorder 1, %s18
      %p290 = scmp.lt.s32.totalorder %s18, 3
      %p291 = pnand %p289, %p290
      %p292 = pneg %p291
      // Predicated region
      $region53: #{mlp1d_forward.1} parent=5 // pred_check
        _
      $region54: #{mlp1d_forward.1} parent=5 // pred_check_branch
        %294 = sbr.rel (%p291) target = $region56
      $region55: #{mlp1d_forward.1} parent=5 // pred_region
        %s295 = ssub.s32 %s18, 1
        %p296 = scmp.lt.s32.totalorder %s23, 1
        %s297 = scalar_select %p296, %s23, 1
        %s298 = smul.addr %s297, 2
        %s299 = smul.addr %s298, 4
        %s300 = scalar_lea.vmem %s0, %s299
        %p301 = pneg %p44
        %p302 = pneg %p41
        %p303 = pneg %p65
        %p304 = pneg %p62
        %p305 = pneg %p86
        %p306 = pneg %p83
        %p307 = pneg %p107
        %p308 = pneg %p104
        %p309 = pneg %p128
        %p310 = pneg %p125
        %p311 = pneg %p149
        %p312 = pneg %p146
        %p313 = pneg %p170
        %p314 = pneg %p167
        %p315 = pneg %p191
        %p316 = pneg %p188
        %p317 = pneg %p212
        %p318 = pneg %p209
        %p319 = pneg %p238
        %p320 = pneg %p235
        %s321 = sand.u32 %s225, 1
        %s322 = scalar_lea.sflag [#allocation5], %s321
        %s323 = sand.u32 %s225, 1
        %s324 = smul.addr %s323, 16
        %s325 = scalar_lea.vmem [#allocation4], %s324
        %p326 = scmp.lt.s32.totalorder %s23, 1
        %s327 = scalar_select %p326, %s23, 1
        %s328 = smul.addr %s327, 2
        %s329 = smul.addr %s328, 4
        %s330 = scalar_lea.vmem %s0, %s329
        loop: start=0, step=1, limit=2
        $region57: #{mlp1d_forward.1} parent=55 // loop_pre_header
          _
        $region58: #{mlp1d_forward.1} parent=55 // loop_header
          %s332 = sphi 0, %s336
          %p333 = scmp.ge.s32.totalorder %s332, 2
          %v337 = vphi 0.0, %v493
        $region59: #{mlp1d_forward.1} parent=55 // loop_header_branch
          %335 = sbr.rel (%p333) target = $region63
        $region60: #{mlp1d_forward.1} parent=55 // loop_body
          %s338 = smul.u32 %s332, 128
          %s339 = sshra.s32 %s338, 7
          %s340 = sand.u32 %s338, 127
          %s341 = smul.addr %s339, 4
          %s342 = scalar_lea.vmem %s330, %s341
          %v343 = vld [vmem:[%s342] sm:$0xf]
          %v344 = vld [vmem:[%s1] sm:$0xff]
          %v345 = vld [vmem:[%s1 + $0x8] sm:$0xff]
          %v346 = vld [vmem:[%s1 + $0x10] sm:$0xff]
          %v347 = vld [vmem:[%s1 + $0x18] sm:$0xff]
          %v348 = vld [vmem:[%s2] sm:$0xff]
          %v349 = vld [vmem:[%s2 + $0x8] sm:$0xff]
          %v350 = vld [vmem:[%s2 + $0x10] sm:$0xff]
          %v351 = vld [vmem:[%s2 + $0x18] sm:$0xff]
          %353 = vset.pattern.permute.xlu0 0
          %354 = vperm.xlu0 %353, %v348
          %v355 = vpop.permute.xlu0 %354
          %358 = vset.pattern.permute.xlu0 0
          %359 = vperm.xlu0 %358, %v349
          %v360 = vpop.permute.xlu0 %359
          %363 = vset.pattern.permute.xlu0 0
          %364 = vperm.xlu0 %363, %v350
          %v365 = vpop.permute.xlu0 %364
          %368 = vset.pattern.permute.xlu0 0
          %369 = vperm.xlu0 %368, %v351
          %v370 = vpop.permute.xlu0 %369
          %vm372 = vcmask 31744
          %v374 = vsel %vm372, %v344, 0
          %v377 = vsel %vm372, %v345, 0
          %v380 = vsel %vm372, %v346, 0
          %v383 = vsel %vm372, %v347, 0
          %vm385 = vcmask 1043456
          %v387 = vsel %vm385, %v343, 0
          %389 = vmatprep.subr.mxu0 0.0
          %390 = vmatpush1.msra.mxu0 0.0
          %391 = vmatprep.subr.mxu0 0.0
          %392 = vmatpush1.msra.mxu0 0.0
          %393 = vmatprep.subr.mxu0 0.0
          %394 = vmatpush1.msra.mxu0 0.0
          %395 = vmatprep.subr.mxu0 0.0
          %396 = vmatpush1.msra.mxu0 0.0
          %397 = vmatprep.subr.mxu0 0.0
          %398 = vmatpush1.msra.mxu0 0.0
          %399 = vmatprep.subr.mxu0 0.0
          %400 = vmatpush1.msra.mxu0 0.0
          %401 = vmatprep.subr.mxu0 0.0
          %402 = vmatpush1.msra.mxu0 0.0
          %403 = vmatprep.subr.mxu0 0.0
          %404 = vmatpush1.msra.mxu0 0.0
          %405 = vmatprep.subr.mxu0 0.0
          %406 = vmatpush1.msra.mxu0 0.0
          %407 = vmatprep.subr.mxu0 0.0
          %408 = vmatpush1.msra.mxu0 0.0
          %409 = vmatprep.subr.mxu0 0.0
          %410 = vmatpush1.msra.mxu0 0.0
          %411 = vmatprep.subr.mxu0 0.0
          %412 = vmatpush1.msra.mxu0 0.0
          %413 = vmatprep.subr.mxu0 0.0
          %414 = vmatpush1.msra.mxu0 0.0
          %415 = vmatprep.subr.mxu0 0.0
          %416 = vmatpush1.msra.mxu0 0.0
          %417 = vmatprep.subr.mxu0 0.0
          %418 = vmatpush1.msra.mxu0 0.0
          %419 = vmatprep.subr.mxu0 0.0
          %420 = vmatpush1.msra.mxu0 %v387
          %421 = vmatprep.subr.mxu0 0.0
          %422 = vmatpush2.msra.mxu0 0.0
          %423 = vmatprep.subr.mxu0 0.0
          %424 = vmatpush2.msra.mxu0 0.0
          %425 = vmatprep.subr.mxu0 0.0
          %426 = vmatpush2.msra.mxu0 0.0
          %427 = vmatprep.subr.mxu0 0.0
          %428 = vmatpush2.msra.mxu0 0.0
          %429 = vmatprep.subr.mxu0 0.0
          %430 = vmatpush2.msra.mxu0 0.0
          %431 = vmatprep.subr.mxu0 0.0
          %432 = vmatpush2.msra.mxu0 0.0
          %433 = vmatprep.subr.mxu0 0.0
          %434 = vmatpush2.msra.mxu0 0.0
          %435 = vmatprep.subr.mxu0 0.0
          %436 = vmatpush2.msra.mxu0 0.0
          %437 = vmatprep.subr.mxu0 0.0
          %438 = vmatpush2.msra.mxu0 0.0
          %439 = vmatprep.subr.mxu0 0.0
          %440 = vmatpush2.msra.mxu0 0.0
          %441 = vmatprep.subr.mxu0 0.0
          %442 = vmatpush2.msra.mxu0 0.0
          %443 = vmatprep.subr.mxu0 0.0
          %444 = vmatpush2.msra.mxu0 0.0
          %445 = vmatprep.subr.mxu0 0.0
          %446 = vmatpush2.msra.mxu0 0.0
          %447 = vmatprep.subr.mxu0 0.0
          %448 = vmatpush2.msra.mxu0 0.0
          %449 = vmatprep.subr.mxu0 0.0
          %450 = vmatpush2.msra.mxu0 0.0
          %451 = vmatprep.subr.mxu0 0.0
          %452 = vmatpush2.msra.mxu0 0.0
          %453 = vmatprep.mubr.f32.mxu0 0.0
          %454 = vmatmul.mubr.f32.gmra.mxu0 %v374
          %v455 = vpop.f32.mrf.mxu0
          %v456 = vadd.f32 %v355, %v455
          %v457 = vpop.f32.mrf.mxu0
          %458 = vmatprep.mubr.f32.mxu0 0.0
          %459 = vmatmul.mubr.f32.gmra.mxu0 %v377
          %v460 = vpop.f32.mrf.mxu0
          %v461 = vadd.f32 %v360, %v460
          %v462 = vpop.f32.mrf.mxu0
          %463 = vmatprep.mubr.f32.mxu0 0.0
          %464 = vmatmul.mubr.f32.gmra.mxu0 %v380
          %v465 = vpop.f32.mrf.mxu0
          %v466 = vadd.f32 %v365, %v465
          %v467 = vpop.f32.mrf.mxu0
          %468 = vmatprep.mubr.f32.mxu0 0.0
          %469 = vmatmul.mubr.f32.gmra.mxu0 %v383
          %v470 = vpop.f32.mrf.mxu0
          %v471 = vadd.f32 %v370, %v470
          %v472 = vpop.f32.mrf.mxu0
          %473 = vdwg.mxu0
          %s474 = smul.addr %s339, 8
          %s475 = scalar_lea.vmem [#allocation2], %s474
          %476 = vst [vmem:[%s475] sm:$0xff] %v456
          %477 = vst [vmem:[%s475 + $0x10] sm:$0xff] %v461
          %478 = vst [vmem:[%s475 + $0x20] sm:$0xff] %v466
          %479 = vst [vmem:[%s475 + $0x30] sm:$0xff] %v471
          %v480 = vadd.f32 %v456, %v461
          %v481 = vadd.f32 %v480, %v466
          %v482 = vadd.f32 %v481, %v471
          %483 = vadd.xlane.f32.xlu0 %v482
          %v484 = vpop.xlane.xlu0 %483
          %v485 = vrot.slane %v484, 4
          %v486 = vadd.f32 %v484, %v485
          %v487 = vrot.slane %v486, 2
          %v488 = vadd.f32 %v486, %v487
          %v489 = vrot.slane %v488, 1
          %v490 = vadd.f32 %v488, %v489
          %s491 = vtos %v490
          %v492 = vstv %s491
          %v493 = vadd.f32 %v337, %v492
        $region61: #{mlp1d_forward.1} parent=55 // loop_footer
          %s336 = sadd.s32 1, %s332
        $region62: #{mlp1d_forward.1} parent=55 // loop_footer_branch
          %331 = sbr.rel target = $region58
        $region63: #{mlp1d_forward.1} parent=55 // loop_exit
          _
        %v494 = vmul.f32 %v337, 0.00012207031
        loop: start=0, step=1, limit=2
        $region64: #{mlp1d_forward.1} parent=55 // loop_pre_header
          _
        $region65: #{mlp1d_forward.1} parent=55 // loop_header
          %s496 = sphi 0, %s500
          %p497 = scmp.ge.s32.totalorder %s496, 2
          %v501 = vphi 0.0, %v532
        $region66: #{mlp1d_forward.1} parent=55 // loop_header_branch
          %499 = sbr.rel (%p497) target = $region70
        $region67: #{mlp1d_forward.1} parent=55 // loop_body
          %s502 = smul.u32 %s496, 128
          %s503 = sshra.s32 %s502, 7
          %s504 = sand.u32 %s502, 127
          %s505 = smul.addr %s503, 8
          %s506 = scalar_lea.vmem [#allocation2], %s505
          %v507 = vld [vmem:[%s506] sm:$0xff]
          %v508 = vld [vmem:[%s506 + $0x10] sm:$0xff]
          %v509 = vld [vmem:[%s506 + $0x20] sm:$0xff]
          %v510 = vld [vmem:[%s506 + $0x30] sm:$0xff]
          %v511 = vsub.f32 %v507, %v494
          %v512 = vsub.f32 %v508, %v494
          %v513 = vsub.f32 %v509, %v494
          %v514 = vsub.f32 %v510, %v494
          %v515 = vmul.f32 %v511, %v511
          %v516 = vmul.f32 %v512, %v512
          %v517 = vmul.f32 %v513, %v513
          %v518 = vmul.f32 %v514, %v514
          %v519 = vadd.f32 %v515, %v516
          %v520 = vadd.f32 %v519, %v517
          %v521 = vadd.f32 %v520, %v518
          %522 = vadd.xlane.f32.xlu0 %v521
          %v523 = vpop.xlane.xlu0 %522
          %v524 = vrot.slane %v523, 4
          %v525 = vadd.f32 %v523, %v524
          %v526 = vrot.slane %v525, 2
          %v527 = vadd.f32 %v525, %v526
          %v528 = vrot.slane %v527, 1
          %v529 = vadd.f32 %v527, %v528
          %s530 = vtos %v529
          %v531 = vstv %s530
          %v532 = vadd.f32 %v501, %v531
        $region68: #{mlp1d_forward.1} parent=55 // loop_footer
          %s500 = sadd.s32 1, %s496
        $region69: #{mlp1d_forward.1} parent=55 // loop_footer_branch
          %495 = sbr.rel target = $region65
        $region70: #{mlp1d_forward.1} parent=55 // loop_exit
          _
        %v533 = vmul.f32 %v501, 0.00012207031
        %v534 = vadd.f32 %v533, 1e-05
        %v535 = vrsqrt.pop %v534
        %v536 = vld [vmem:[%s3] sm:$0xff]
        %v537 = vld [vmem:[%s3 + $0x8] sm:$0xff]
        %v538 = vld [vmem:[%s3 + $0x10] sm:$0xff]
        %v539 = vld [vmem:[%s3 + $0x18] sm:$0xff]
        %v540 = vmul.f32 %v536, %v535
        %v541 = vmul.f32 %v537, %v535
        %v542 = vmul.f32 %v538, %v535
        %v543 = vmul.f32 %v539, %v535
        %v544 = vld [vmem:[%s4] sm:$0xff]
        %v545 = vld [vmem:[%s4 + $0x8] sm:$0xff]
        %v546 = vld [vmem:[%s4 + $0x10] sm:$0xff]
        %v547 = vld [vmem:[%s4 + $0x18] sm:$0xff]
        %v548 = vmul.f32 %v494, %v540
        %v549 = vmul.f32 %v494, %v541
        %v550 = vmul.f32 %v494, %v542
        %v551 = vmul.f32 %v494, %v543
        %v552 = vsub.f32 %v544, %v548
        %v553 = vsub.f32 %v545, %v549
        %v554 = vsub.f32 %v546, %v550
        %v555 = vsub.f32 %v547, %v551
        loop: start=0, step=1, limit=2
        $region71: #{mlp1d_forward.1} parent=55 // loop_pre_header
          _
        $region72: #{mlp1d_forward.1} parent=55 // loop_header
          %s557 = sphi 0, %s561
          %p558 = scmp.ge.s32.totalorder %s557, 2
          %v562 = vphi 0.0, %v734
        $region73: #{mlp1d_forward.1} parent=55 // loop_header_branch
          %560 = sbr.rel (%p558) target = $region77
        $region74: #{mlp1d_forward.1} parent=55 // loop_body
          %s563 = smul.u32 %s557, 128
          %s564 = sshra.s32 %s563, 7
          %s565 = sand.u32 %s563, 127
          %s566 = smul.addr %s564, 8
          %s567 = scalar_lea.vmem [#allocation2], %s566
          %v568 = vld [vmem:[%s567] sm:$0xff]
          %v569 = vld [vmem:[%s567 + $0x10] sm:$0xff]
          %v570 = vld [vmem:[%s567 + $0x20] sm:$0xff]
          %v571 = vld [vmem:[%s567 + $0x30] sm:$0xff]
          %573 = vset.pattern.permute.xlu0 0
          %574 = vperm.xlu0 %573, %v540
          %v575 = vpop.permute.xlu0 %574
          %578 = vset.pattern.permute.xlu0 0
          %579 = vperm.xlu0 %578, %v541
          %v580 = vpop.permute.xlu0 %579
          %583 = vset.pattern.permute.xlu0 0
          %584 = vperm.xlu0 %583, %v542
          %v585 = vpop.permute.xlu0 %584
          %588 = vset.pattern.permute.xlu0 0
          %589 = vperm.xlu0 %588, %v543
          %v590 = vpop.permute.xlu0 %589
          %v592 = vmul.f32 %v568, %v575
          %v593 = vmul.f32 %v569, %v580
          %v594 = vmul.f32 %v570, %v585
          %v595 = vmul.f32 %v571, %v590
          %597 = vset.pattern.permute.xlu0 0
          %598 = vperm.xlu0 %597, %v552
          %v599 = vpop.permute.xlu0 %598
          %602 = vset.pattern.permute.xlu0 0
          %603 = vperm.xlu0 %602, %v553
          %v604 = vpop.permute.xlu0 %603
          %607 = vset.pattern.permute.xlu0 0
          %608 = vperm.xlu0 %607, %v554
          %v609 = vpop.permute.xlu0 %608
          %612 = vset.pattern.permute.xlu0 0
          %613 = vperm.xlu0 %612, %v555
          %v614 = vpop.permute.xlu0 %613
          %v616 = vadd.f32 %v592, %v599
          %v617 = vadd.f32 %v593, %v604
          %v618 = vadd.f32 %v594, %v609
          %v619 = vadd.f32 %v595, %v614
          %v620 = vmul.f32 %v616, 0.5
          %v621 = vmul.f32 %v617, 0.5
          %v622 = vmul.f32 %v618, 0.5
          %v623 = vmul.f32 %v619, 0.5
          %v624 = vmul.f32 %v616, 0.70710677
          %v625 = vmul.f32 %v617, 0.70710677
          %v626 = vmul.f32 %v618, 0.70710677
          %v627 = vmul.f32 %v619, 0.70710677
          %v628 = verf.f32.pop %v624
          %v629 = verf.f32.pop %v625
          %v630 = verf.f32.pop %v626
          %v631 = verf.f32.pop %v627
          %v632 = vadd.f32 %v628, 1.0
          %v633 = vadd.f32 %v629, 1.0
          %v634 = vadd.f32 %v630, 1.0
          %v635 = vadd.f32 %v631, 1.0
          %v636 = vmul.f32 %v620, %v632
          %v637 = vmul.f32 %v621, %v633
          %v638 = vmul.f32 %v622, %v634
          %v639 = vmul.f32 %v623, %v635
          %v640 = vld [vmem:[%s5] sm:$0xff]
          %v641 = vld [vmem:[%s6] sm:$0xff]
          %643 = vset.pattern.permute.xlu0 0
          %644 = vperm.xlu0 %643, %v641
          %v645 = vpop.permute.xlu0 %644
          %vm647 = vcmask 261120
          %v649 = vsel %vm647, %v640, 0
          %651 = vmatprep.subr.mxu0 0.0
          %652 = vmatpush1.msra.mxu0 0.0
          %653 = vmatprep.subr.mxu0 0.0
          %654 = vmatpush1.msra.mxu0 0.0
          %655 = vmatprep.subr.mxu0 0.0
          %656 = vmatpush1.msra.mxu0 0.0
          %657 = vmatprep.subr.mxu0 0.0
          %658 = vmatpush1.msra.mxu0 0.0
          %659 = vmatprep.subr.mxu0 0.0
          %660 = vmatpush1.msra.mxu0 0.0
          %661 = vmatprep.subr.mxu0 0.0
          %662 = vmatpush1.msra.mxu0 0.0
          %663 = vmatprep.subr.mxu0 0.0
          %664 = vmatpush1.msra.mxu0 0.0
          %665 = vmatprep.subr.mxu0 0.0
          %666 = vmatpush1.msra.mxu0 0.0
          %667 = vmatprep.subr.mxu0 0.0
          %668 = vmatpush1.msra.mxu0 0.0
          %669 = vmatprep.subr.mxu0 0.0
          %670 = vmatpush1.msra.mxu0 0.0
          %671 = vmatprep.subr.mxu0 0.0
          %672 = vmatpush1.msra.mxu0 0.0
          %673 = vmatprep.subr.mxu0 0.0
          %674 = vmatpush1.msra.mxu0 0.0
          %675 = vmatprep.subr.mxu0 0.0
          %676 = vmatpush1.msra.mxu0 %v639
          %677 = vmatprep.subr.mxu0 0.0
          %678 = vmatpush1.msra.mxu0 %v638
          %679 = vmatprep.subr.mxu0 0.0
          %680 = vmatpush1.msra.mxu0 %v637
          %681 = vmatprep.subr.mxu0 0.0
          %682 = vmatpush1.msra.mxu0 %v636
          %683 = vmatprep.subr.mxu0 0.0
          %684 = vmatpush2.msra.mxu0 0.0
          %685 = vmatprep.subr.mxu0 0.0
          %686 = vmatpush2.msra.mxu0 0.0
          %687 = vmatprep.subr.mxu0 0.0
          %688 = vmatpush2.msra.mxu0 0.0
          %689 = vmatprep.subr.mxu0 0.0
          %690 = vmatpush2.msra.mxu0 0.0
          %691 = vmatprep.subr.mxu0 0.0
          %692 = vmatpush2.msra.mxu0 0.0
          %693 = vmatprep.subr.mxu0 0.0
          %694 = vmatpush2.msra.mxu0 0.0
          %695 = vmatprep.subr.mxu0 0.0
          %696 = vmatpush2.msra.mxu0 0.0
          %697 = vmatprep.subr.mxu0 0.0
          %698 = vmatpush2.msra.mxu0 0.0
          %699 = vmatprep.subr.mxu0 0.0
          %700 = vmatpush2.msra.mxu0 0.0
          %701 = vmatprep.subr.mxu0 0.0
          %702 = vmatpush2.msra.mxu0 0.0
          %703 = vmatprep.subr.mxu0 0.0
          %704 = vmatpush2.msra.mxu0 0.0
          %705 = vmatprep.subr.mxu0 0.0
          %706 = vmatpush2.msra.mxu0 0.0
          %707 = vmatprep.subr.mxu0 0.0
          %708 = vmatpush2.msra.mxu0 0.0
          %709 = vmatprep.subr.mxu0 0.0
          %710 = vmatpush2.msra.mxu0 0.0
          %711 = vmatprep.subr.mxu0 0.0
          %712 = vmatpush2.msra.mxu0 0.0
          %713 = vmatprep.subr.mxu0 0.0
          %714 = vmatpush2.msra.mxu0 0.0
          %715 = vmatprep.mubr.f32.mxu0 0.0
          %716 = vmatmul.mubr.f32.gmra.mxu0 %v649
          %v717 = vpop.f32.mrf.mxu0
          %v718 = vadd.f32 %v645, %v717
          %v719 = vpop.f32.mrf.mxu0
          %720 = vdwg.mxu0
          %s721 = smul.addr %s564, 8
          %s722 = scalar_lea.vmem [#allocation3], %s721
          %723 = vst [vmem:[%s722] sm:$0xff] %v718
          %724 = vadd.xlane.f32.xlu0 %v718
          %v725 = vpop.xlane.xlu0 %724
          %v726 = vrot.slane %v725, 4
          %v727 = vadd.f32 %v725, %v726
          %v728 = vrot.slane %v727, 2
          %v729 = vadd.f32 %v727, %v728
          %v730 = vrot.slane %v729, 1
          %v731 = vadd.f32 %v729, %v730
          %s732 = vtos %v731
          %v733 = vstv %s732
          %v734 = vadd.f32 %v562, %v733
        $region75: #{mlp1d_forward.1} parent=55 // loop_footer
          %s561 = sadd.s32 1, %s557
        $region76: #{mlp1d_forward.1} parent=55 // loop_footer_branch
          %556 = sbr.rel target = $region72
        $region77: #{mlp1d_forward.1} parent=55 // loop_exit
          _
        %v735 = vmul.f32 %v562, 0.00048828125
        loop: start=0, step=1, limit=2
        $region78: #{mlp1d_forward.1} parent=55 // loop_pre_header
          _
        $region79: #{mlp1d_forward.1} parent=55 // loop_header
          %s737 = sphi 0, %s741
          %p738 = scmp.ge.s32.totalorder %s737, 2
          %v742 = vphi 0.0, %v761
        $region80: #{mlp1d_forward.1} parent=55 // loop_header_branch
          %740 = sbr.rel (%p738) target = $region84
        $region81: #{mlp1d_forward.1} parent=55 // loop_body
          %s743 = smul.u32 %s737, 128
          %s744 = sshra.s32 %s743, 7
          %s745 = sand.u32 %s743, 127
          %s746 = smul.addr %s744, 8
          %s747 = scalar_lea.vmem [#allocation3], %s746
          %v748 = vld [vmem:[%s747] sm:$0xff]
          %v749 = vsub.f32 %v748, %v735
          %v750 = vmul.f32 %v749, %v749
          %751 = vadd.xlane.f32.xlu0 %v750
          %v752 = vpop.xlane.xlu0 %751
          %v753 = vrot.slane %v752, 4
          %v754 = vadd.f32 %v752, %v753
          %v755 = vrot.slane %v754, 2
          %v756 = vadd.f32 %v754, %v755
          %v757 = vrot.slane %v756, 1
          %v758 = vadd.f32 %v756, %v757
          %s759 = vtos %v758
          %v760 = vstv %s759
          %v761 = vadd.f32 %v742, %v760
        $region82: #{mlp1d_forward.1} parent=55 // loop_footer
          %s741 = sadd.s32 1, %s737
        $region83: #{mlp1d_forward.1} parent=55 // loop_footer_branch
          %736 = sbr.rel target = $region79
        $region84: #{mlp1d_forward.1} parent=55 // loop_exit
          _
        %v762 = vmul.f32 %v742, 0.00048828125
        %v763 = vadd.f32 %v762, 1e-05
        %v764 = vrsqrt.pop %v763
        %v765 = vld [vmem:[%s7] sm:$0xff]
        %v766 = vmul.f32 %v765, %v764
        %v767 = vld [vmem:[%s8] sm:$0xff]
        %v768 = vmul.f32 %v735, %v766
        %v769 = vsub.f32 %v767, %v768
        loop: start=0, step=1, limit=2
        $region85: #{mlp1d_forward.1} parent=55 // loop_pre_header
          _
        $region86: #{mlp1d_forward.1} parent=55 // loop_header
          %s771 = sphi 0, %s775
          %p772 = scmp.ge.s32.totalorder %s771, 2
        $region87: #{mlp1d_forward.1} parent=55 // loop_header_branch
          %774 = sbr.rel (%p772) target = $region91
        $region88: #{mlp1d_forward.1} parent=55 // loop_body
          %s776 = smul.u32 %s771, 128
          %s777 = sshra.s32 %s776, 7
          %s778 = sand.u32 %s776, 127
          %s779 = smul.addr %s777, 8
          %s780 = scalar_lea.vmem [#allocation3], %s779
          %v781 = vld [vmem:[%s780] sm:$0xff]
          %783 = vset.pattern.permute.xlu0 0
          %784 = vperm.xlu0 %783, %v766
          %v785 = vpop.permute.xlu0 %784
          %v787 = vmul.f32 %v781, %v785
          %789 = vset.pattern.permute.xlu0 0
          %790 = vperm.xlu0 %789, %v769
          %v791 = vpop.permute.xlu0 %790
          %v793 = vadd.f32 %v787, %v791
          %s794 = smul.addr %s777, 8
          %s795 = scalar_lea.vmem %s325, %s794 [#allocation4]
          %796 = vst [vmem:[%s795] sm:$0xff] %v793
        $region89: #{mlp1d_forward.1} parent=55 // loop_footer
          %s775 = sadd.s32 1, %s771
        $region90: #{mlp1d_forward.1} parent=55 // loop_footer_branch
          %770 = sbr.rel target = $region86
        $region91: #{mlp1d_forward.1} parent=55 // loop_exit
          _
        %s797 = sand.u32 %s225, 1
        %s798 = scalar_lea.sflag [#allocation5], %s797
        %s799 = sand.u32 %s225, 1
        %s800 = smul.addr %s799, 16
        %s801 = scalar_lea.vmem [#allocation4], %s800
        // Predicated region
        $region92: #{mlp1d_forward.1} parent=55 // pred_check
          %p802 = pneg %p235
        $region93: #{mlp1d_forward.1} parent=55 // pred_check_branch
          %804 = sbr.rel (%p802) target = $region95
        $region94: #{mlp1d_forward.1} parent=55 // pred_region
          %s806 = ssub.s32 256, 256
          %807 = vsyncadd %s798, %s806
          %s808 = smul.addr %s23, 2
          %s809 = smul.addr %s808, 128
          %s810 = scalar_lea.hbm %s9, %s809
          %s812 = sshll.u32 %s801, 4
          %s813 = int_to_ptr.vmem [resolvable:$true] %s812
          %815 = dma.vmem_to_hbm [thread:$0]  %s813, 256, %s810, %s798
        $region95: #{mlp1d_forward.1} parent=55 // pred_fallthru
          _
      $region56: #{mlp1d_forward.1} parent=5 // pred_fallthru
        _
      %p816 = scmp.le.s32.totalorder 2, %s18
      // Predicated region
      $region96: #{mlp1d_forward.1} parent=5 // pred_check
        %p817 = pneg %p816
      $region97: #{mlp1d_forward.1} parent=5 // pred_check_branch
        %819 = sbr.rel (%p817) target = $region99
      $region98: #{mlp1d_forward.1} parent=5 // pred_region
        %s820 = ssub.s32 %s18, 2
        // Predicated region
        $region100: #{mlp1d_forward.1} parent=98 // pred_check
          %p821 = pneg %p241
        $region101: #{mlp1d_forward.1} parent=98 // pred_check_branch
          %823 = sbr.rel (%p821) target = $region103
        $region102: #{mlp1d_forward.1} parent=98 // pred_region
          %s824 = sand.u32 %s226, 1
          %s825 = scalar_lea.sflag [#allocation5], %s824
          %s826 = sand.u32 %s226, 1
          %s827 = smul.addr %s826, 16
          %s828 = scalar_lea.vmem [#allocation4], %s827
          %829 = dma.done %s825, 256
        $region103: #{mlp1d_forward.1} parent=98 // pred_fallthru
          _
      $region99: #{mlp1d_forward.1} parent=5 // pred_fallthru
        _
    $region6: #{mlp1d_forward.1} parent=1 // loop_footer
      %s22 = sadd.s32 1, %s18
    $region7: #{mlp1d_forward.1} parent=1 // loop_footer_branch
      %17 = sbr.rel target = $region3
    $region8: #{mlp1d_forward.1} parent=1 // loop_exit
      _
    %830 = vsyncpa [#allocation5], 1
    %s831 = scalar_lea.sflag [#allocation5], 1
    %832 = vsyncpa %s831, 1

</llo_original>
